<compile_context>
chip_gen: v5e
topology: v5e:2x2
jax: 0.10.0
libtpu: 0.0.40
codegen_flags: <defaults>
</compile_context>

<pallas_src>
import jax
import jax.numpy as jnp
from jax.experimental import pallas as pl
from jax.experimental.pallas import tpu as pltpu

FEAT_DIM = 256     # MinkUNet18 out_channels
HIDDEN_DIM = 128   # backbone stand-in hidden width
IN_DIM = 3         # MinkUNet18 in_channels (per-voxel features)

LANE = 128
SUBLANE = 8


def _round_up(x, m):
    return ((x + m - 1) // m) * m


# ----------------------------------------------------------------------------
# Backbone kernel (per-voxel feature MLP, 3 -> 128 -> 256)
# TODO(synk): MinkUNet18's sparse Minkowski convolutions (data-dependent voxel
# neighborhood gathers) have no clean Pallas equivalent; the backbone is stood
# in by a per-voxel MLP with the same channel contract (3 -> 256).
# ----------------------------------------------------------------------------
def _backbone_kernel(x_ref, w0_ref, b0_ref, w1_ref, b1_ref, o_ref):
    x = x_ref[...]                      # (tile_n, 3)  f32
    w0 = w0_ref[...]                    # (3, HIDDEN)  f32
    # K=3 contraction on the VPU (broadcast-mul-add): a 3-deep MXU dot would
    # fill only 3/256 of the systolic array and pay full push/pop latency.
    h = (x[:, 0:1] * w0[0:1, :]
         + x[:, 1:2] * w0[1:2, :]
         + x[:, 2:3] * w0[2:3, :]) + b0_ref[...]
    h = jnp.maximum(h, 0.0)
    o = jnp.dot(h, w1_ref[...], preferred_element_type=jnp.float32)
    o_ref[...] = (o + b1_ref[...]).astype(o_ref.dtype)


def backbone_mlp(feats, w0, b0, w1, b1, *, max_tile=2048):
    n = feats.shape[0]
    tile_n = max_tile if n >= max_tile else _round_up(n, SUBLANE)
    n_pad = _round_up(n, tile_n)
    feats_p = feats if n_pad == n else jnp.pad(feats, ((0, n_pad - n), (0, 0)))
    out = pl.pallas_call(
        _backbone_kernel,
        out_shape=jax.ShapeDtypeStruct((n_pad, FEAT_DIM), jnp.float32),
        grid_spec=pltpu.PrefetchScalarGridSpec(
            num_scalar_prefetch=0,
            grid=(n_pad // tile_n,),
            in_specs=[
                pl.BlockSpec((tile_n, IN_DIM), lambda i: (i, 0)),
                pl.BlockSpec((IN_DIM, HIDDEN_DIM), lambda i: (0, 0)),
                pl.BlockSpec((1, HIDDEN_DIM), lambda i: (0, 0)),
                pl.BlockSpec((HIDDEN_DIM, FEAT_DIM), lambda i: (0, 0)),
                pl.BlockSpec((1, FEAT_DIM), lambda i: (0, 0)),
            ],
            out_specs=pl.BlockSpec((tile_n, FEAT_DIM), lambda i: (i, 0)),
        ),
        compiler_params=pltpu.CompilerParams(
            dimension_semantics=("parallel",),
            vmem_limit_bytes=32 * 1024 * 1024,
        ),
    )(feats_p, w0, b0, w1, b1)
    return out[:n] if n_pad != n else out


# ----------------------------------------------------------------------------
# ApproachNet kernel: two 1x1 Conv1d layers fused, tiled over points.
#   conv1: 256 -> 256, ReLU ; conv2: 256 -> num_view (view scores)
# Emits:
#   seed_t (C, tile_n)  : transposed input block   -> seed_features (B, C, N)
#   feat_t (C, tile_n)  : transposed ReLU features -> vp_features   (B, C, N)
#   score  (tile_n, V)  : view scores at true width num_view
#   idx    (tile_n, 1)  : fused argmax over views (grasp_top_view_inds)
# ----------------------------------------------------------------------------
def _approach_kernel(x_ref, w1_ref, b1_ref, w2_ref, b2_ref,
                     seed_t_ref, feat_t_ref, score_ref, idx_ref):
    x = x_ref[...]                                   # (tile_n, C) f32
    # In-kernel transpose rides the XLU slot; replaces a full XLA transpose pass.
    seed_t_ref[...] = jnp.transpose(x).astype(seed_t_ref.dtype)

    h = jnp.dot(x.astype(jnp.bfloat16), w1_ref[...],
                preferred_element_type=jnp.float32)
    h = jnp.maximum(h + b1_ref[...], 0.0)            # f32 (tile_n, C)
    feat_t_ref[...] = jnp.transpose(h).astype(feat_t_ref.dtype)

    s = jnp.dot(h.astype(jnp.bfloat16), w2_ref[...],
                preferred_element_type=jnp.float32) + b2_ref[...]   # (tile_n, V_pad)
    num_view = score_ref.shape[-1]
    score_ref[...] = s[:, :num_view].astype(score_ref.dtype)

    # Fused argmax (first-max index, matching torch/np semantics).  Padded view
    # columns carry a -1e30 bias so they never win.
    v_pad = s.shape[-1]
    col = jax.lax.broadcasted_iota(jnp.int32, s.shape, 1)
    best = jnp.max(s, axis=-1, keepdims=True)
    idx = jnp.min(jnp.where(s == best, col, v_pad), axis=-1, keepdims=True)
    idx_ref[...] = idx.astype(idx_ref.dtype)


def approach_net(seed_bnc, w1, b1, w2, b2, num_view, *, max_tile=1024):
    B, N, C = seed_bnc.shape
    v_pad = _round_up(num_view, LANE)                 # e.g. 300 -> 384 for the MXU

    # Pick tile_n so n_pad == N whenever possible (no post-kernel slice copies).
    if N <= max_tile:
        tile_n = N                                    # single tile: block == full dim
        n_pad = N
    else:
        tile_n = None
        for cand in (max_tile, 512, 256, 128):        # 128-multiples keep stores lane-dense
            if N % cand == 0:
                tile_n = cand
                break
        if tile_n is None:
            tile_n = max_tile
        n_pad = _round_up(N, tile_n)
    nt = n_pad // tile_n
    # NOTE(v7x megacore): (B, nt) is fully "parallel"; with B >= 2 or nt >= 2 both
    # TensorCores get work.

    # No host-side bf16 cast of activations: kernel reads f32, casts at the dot.
    x = seed_bnc if n_pad == N else jnp.pad(seed_bnc, ((0, 0), (0, n_pad - N), (0, 0)))
    w1_b = w1.astype(jnp.bfloat16)
    w2_b = jnp.pad(w2, ((0, 0), (0, v_pad - num_view))).astype(jnp.bfloat16)
    b2_p = jnp.pad(b2, ((0, 0), (0, v_pad - num_view)), constant_values=-1e30)

    seed_t, feat_t, score, idx = pl.pallas_call(
        _approach_kernel,
        out_shape=(
            jax.ShapeDtypeStruct((B, C, n_pad), jnp.float32),      # seed_features (B,C,N)
            jax.ShapeDtypeStruct((B, C, n_pad), jnp.float32),      # vp_features   (B,C,N)
            jax.ShapeDtypeStruct((B, n_pad, num_view), jnp.float32),
            jax.ShapeDtypeStruct((B, n_pad, 1), jnp.int32),
        ),
        grid_spec=pltpu.PrefetchScalarGridSpec(
            num_scalar_prefetch=0,
            grid=(B, nt),
            in_specs=[
                pl.BlockSpec((pl.Squeezed(), tile_n, C), lambda b, t: (b, t, 0)),
                pl.BlockSpec((C, C), lambda b, t: (0, 0)),
                pl.BlockSpec((1, C), lambda b, t: (0, 0)),
                pl.BlockSpec((C, v_pad), lambda b, t: (0, 0)),
                pl.BlockSpec((1, v_pad), lambda b, t: (0, 0)),
            ],
            out_specs=[
                pl.BlockSpec((pl.Squeezed(), C, tile_n), lambda b, t: (b, 0, t)),
                pl.BlockSpec((pl.Squeezed(), C, tile_n), lambda b, t: (b, 0, t)),
                pl.BlockSpec((pl.Squeezed(), tile_n, num_view), lambda b, t: (b, t, 0)),
                pl.BlockSpec((pl.Squeezed(), tile_n, 1), lambda b, t: (b, t, 0)),
            ],
        ),
        compiler_params=pltpu.CompilerParams(
            dimension_semantics=("parallel", "parallel"),
            vmem_limit_bytes=48 * 1024 * 1024,   # ~9-12 MB live at tile_n=1024; fits v7x
        ),
    )(x, w1_b, b1, w2_b, b2_p)

    if n_pad != N:
        seed_t = seed_t[:, :, :N]
        feat_t = feat_t[:, :, :N]
        score = score[:, :N]
        idx = idx[:, :N]
    return seed_t, feat_t, score, idx[..., 0]


# ----------------------------------------------------------------------------
# GraspNetStage1 forward (glue)
# ----------------------------------------------------------------------------
def graspnet_stage1_forward(end_points, params, *, num_view, is_training=False):
    pointcloud = end_points["point_clouds"]                # (B, num_points, 3)
    end_points["input_xyz"] = pointcloud
    B, num_points, _ = pointcloud.shape

    feats = end_points["feats"]                            # (N_voxels, 3)
    # end_points['coors'] is consumed by the sparse-conv backbone only;
    # unused by the dense per-voxel stand-in (see TODO above).

    seed_all = backbone_mlp(
        feats, params["bb_w0"], params["bb_b0"], params["bb_w1"], params["bb_b1"]
    )                                                      # (N_voxels, 256)

    # seed_features[quantize2original].view(B, num_points, -1)
    # TODO(synk): the gather stays in XLA; fusing it into the approach kernel
    # (scalar-prefetched indices + VMEM-resident seed_all) is a follow-up.
    gathered = jnp.take(seed_all, end_points["quantize2original"], axis=0)
    seed_bnc = gathered.reshape(B, num_points, FEAT_DIM)   # (B, N, 256) f32

    seed_t, vp_t, view_score, top_inds = approach_net(
        seed_bnc, params["ap_w1"], params["ap_b1"], params["ap_w2"], params["ap_b2"],
        num_view,
    )
    end_points["seed_features"] = seed_t                   # (B, 256, N) — transposed in-kernel
    end_points["view_score"] = view_score                  # (B, N, num_view)
    end_points["vp_features"] = vp_t                       # (B, 256, N) — transposed in-kernel
    end_points["grasp_top_view_inds"] = top_inds           # (B, N) int32 (fused argmax)
    # TODO(synk): farthest-point sampling of seeds and grasp-view template /
    # rotation-matrix generation from ApproachNet_regression_view_fps are
    # geometry utilities not shown in the reference; omitted here.
    return end_points


def init_params(key, num_view):
    ks = jax.random.split(key, 4)
    return {
        "bb_w0": jax.random.normal(ks[0], (IN_DIM, HIDDEN_DIM), jnp.float32) * 0.1,
        "bb_b0": jnp.zeros((1, HIDDEN_DIM), jnp.float32),
        "bb_w1": jax.random.normal(ks[1], (HIDDEN_DIM, FEAT_DIM), jnp.float32) * 0.05,
        "bb_b1": jnp.zeros((1, FEAT_DIM), jnp.float32),
        "ap_w1": jax.random.normal(ks[2], (FEAT_DIM, FEAT_DIM), jnp.float32) * 0.05,
        "ap_b1": jnp.zeros((1, FEAT_DIM), jnp.float32),
        "ap_w2": jax.random.normal(ks[3], (FEAT_DIM, num_view), jnp.float32) * 0.05,
        "ap_b2": jnp.zeros((1, num_view), jnp.float32),
    }


if __name__ == "__main__":
    key = jax.random.PRNGKey(0)
    B, num_points, num_view = 2, 128, 300
    n_voxels = 192  # quantization dedups points, so n_voxels <= B * num_points

    k_pc, k_feat, k_q, k_param = jax.random.split(key, 4)
    point_clouds = jax.random.normal(k_pc, (B, num_points, 3), jnp.float32)
    coors = jnp.concatenate(
        [
            (jnp.arange(n_voxels, dtype=jnp.int32) % B)[:, None],
            jax.random.randint(k_feat, (n_voxels, 3), 0, 50, jnp.int32),
        ],
        axis=1,
    )                                                       # (N_voxels, 4) batched coords
    feats = jax.random.normal(k_feat, (n_voxels, 3), jnp.float32)
    quantize2original = jax.random.randint(
        k_q, (B * num_points,), 0, n_voxels, jnp.int32
    )

    params = init_params(k_param, num_view)
    end_points = {
        "point_clouds": point_clouds,
        "coors": coors,
        "feats": feats,
        "quantize2original": quantize2original,
    }

    out = graspnet_stage1_forward(end_points, params, num_view=num_view,
                                  is_training=False)
    jax.block_until_ready(out["view_score"])
    jax.block_until_ready(out["seed_features"])
    jax.block_until_ready(out["vp_features"])
    jax.block_until_ready(out["grasp_top_view_inds"])

    assert out["seed_features"].shape == (B, FEAT_DIM, num_points)
    assert out["view_score"].shape == (B, num_points, num_view)
    assert out["vp_features"].shape == (B, FEAT_DIM, num_points)
    assert out["grasp_top_view_inds"].shape == (B, num_points)
    assert out["grasp_top_view_inds"].dtype == jnp.int32

    # In-kernel transpose of seed_features must match the XLA reference path.
    seed_all_ref = backbone_mlp(
        feats, params["bb_w0"], params["bb_b0"], params["bb_w1"], params["bb_b1"]
    )
    seed_bnc_ref = jnp.take(seed_all_ref, quantize2original, axis=0).reshape(
        B, num_points, FEAT_DIM
    )
    assert bool(jnp.allclose(out["seed_features"],
                             jnp.transpose(seed_bnc_ref, (0, 2, 1))))

    # Fused in-kernel argmax must agree with a plain argmax over the returned scores.
    ref_idx = jnp.argmax(out["view_score"], axis=2).astype(jnp.int32)
    assert bool(jnp.all(out["grasp_top_view_inds"] == ref_idx))
    print("KERNEL_OK")
</pallas_src>

<mosaic_0001>
module attributes {stable_mosaic.version = 11 : i64} {
  func.func @_backbone_kernel(%arg0: i32, %arg1: memref<192x3xf32, #tpu.memory_space<vmem>>, %arg2: memref<3x128xf32, #tpu.memory_space<vmem>>, %arg3: memref<1x128xf32, #tpu.memory_space<vmem>>, %arg4: memref<128x256xf32, #tpu.memory_space<vmem>>, %arg5: memref<1x256xf32, #tpu.memory_space<vmem>>, %arg6: memref<192x256xf32, #tpu.memory_space<vmem>>) attributes {dimension_semantics = [#tpu.dimension_semantics<parallel>], iteration_bounds = array<i64: 1>, scalar_prefetch = 0 : i64, scratch_operands = 0 : i64, tpu.core_type = #tpu.core_type<tc>, window_params = [{transform_indices = @transform_0, window_bounds = array<i64: 192, 3>}, {pipeline_mode = #tpu.pipeline_mode<synchronous>, transform_indices = @transform_1, window_bounds = array<i64: 3, 128>}, {pipeline_mode = #tpu.pipeline_mode<synchronous>, transform_indices = @transform_2, window_bounds = array<i64: 1, 128>}, {pipeline_mode = #tpu.pipeline_mode<synchronous>, transform_indices = @transform_3, window_bounds = array<i64: 128, 256>}, {pipeline_mode = #tpu.pipeline_mode<synchronous>, transform_indices = @transform_4, window_bounds = array<i64: 1, 256>}, {transform_indices = @transform_5, window_bounds = array<i64: 192, 256>}]} {
    %c0 = arith.constant 0 : index
    %c0_0 = arith.constant 0 : index
    %0 = vector.load %arg1[%c0, %c0_0] : memref<192x3xf32, #tpu.memory_space<vmem>>, vector<192x3xf32>
    %c0_1 = arith.constant 0 : index
    %c0_2 = arith.constant 0 : index
    %1 = vector.load %arg2[%c0_1, %c0_2] : memref<3x128xf32, #tpu.memory_space<vmem>>, vector<3x128xf32>
    %2 = vector.extract_strided_slice %0 {offsets = [0, 0], sizes = [192, 1], strides = [1, 1]} : vector<192x3xf32> to vector<192x1xf32>
    %3 = vector.extract_strided_slice %1 {offsets = [0, 0], sizes = [1, 128], strides = [1, 1]} : vector<3x128xf32> to vector<1x128xf32>
    %4 = vector.broadcast %2 : vector<192x1xf32> to vector<192x128xf32>
    %5 = vector.broadcast %3 : vector<1x128xf32> to vector<192x128xf32>
    %6 = arith.mulf %4, %5 : vector<192x128xf32>
    %7 = vector.extract_strided_slice %0 {offsets = [0, 1], sizes = [192, 1], strides = [1, 1]} : vector<192x3xf32> to vector<192x1xf32>
    %8 = vector.extract_strided_slice %1 {offsets = [1, 0], sizes = [1, 128], strides = [1, 1]} : vector<3x128xf32> to vector<1x128xf32>
    %9 = vector.broadcast %7 : vector<192x1xf32> to vector<192x128xf32>
    %10 = vector.broadcast %8 : vector<1x128xf32> to vector<192x128xf32>
    %11 = arith.mulf %9, %10 : vector<192x128xf32>
    %12 = arith.addf %6, %11 : vector<192x128xf32>
    %13 = vector.extract_strided_slice %0 {offsets = [0, 2], sizes = [192, 1], strides = [1, 1]} : vector<192x3xf32> to vector<192x1xf32>
    %14 = vector.extract_strided_slice %1 {offsets = [2, 0], sizes = [1, 128], strides = [1, 1]} : vector<3x128xf32> to vector<1x128xf32>
    %15 = vector.broadcast %13 : vector<192x1xf32> to vector<192x128xf32>
    %16 = vector.broadcast %14 : vector<1x128xf32> to vector<192x128xf32>
    %17 = arith.mulf %15, %16 : vector<192x128xf32>
    %18 = arith.addf %12, %17 : vector<192x128xf32>
    %c0_3 = arith.constant 0 : index
    %c0_4 = arith.constant 0 : index
    %19 = vector.load %arg3[%c0_3, %c0_4] : memref<1x128xf32, #tpu.memory_space<vmem>>, vector<1x128xf32>
    %20 = vector.broadcast %19 : vector<1x128xf32> to vector<192x128xf32>
    %21 = arith.addf %18, %20 : vector<192x128xf32>
    %cst = arith.constant 0.000000e+00 : f32
    %22 = vector.broadcast %cst : f32 to vector<192x128xf32>
    %23 = arith.maximumf %21, %22 : vector<192x128xf32>
    %c0_5 = arith.constant 0 : index
    %c0_6 = arith.constant 0 : index
    %24 = vector.load %arg4[%c0_5, %c0_6] : memref<128x256xf32, #tpu.memory_space<vmem>>, vector<128x256xf32>
    %cst_7 = arith.constant dense<0.000000e+00> : vector<192x256xf32>
    %25 = tpu.matmul %23, %24, %cst_7 {dimension_numbers = #tpu.dot_dimension_numbers<[1], [0], [0], [1], [0, 0, 1, 1], [], []>} : vector<192x128xf32>, vector<128x256xf32>, vector<192x256xf32> -> vector<192x256xf32>
    %c0_8 = arith.constant 0 : index
    %c0_9 = arith.constant 0 : index
    %26 = vector.load %arg5[%c0_8, %c0_9] : memref<1x256xf32, #tpu.memory_space<vmem>>, vector<1x256xf32>
    %27 = vector.broadcast %26 : vector<1x256xf32> to vector<192x256xf32>
    %28 = arith.addf %25, %27 : vector<192x256xf32>
    %c0_10 = arith.constant 0 : index
    %c0_11 = arith.constant 0 : index
    %29 = vector.load %arg6[%c0_10, %c0_11] : memref<192x256xf32, #tpu.memory_space<vmem>>, vector<192x256xf32>
    tpu.vector_store %arg6[%c0_10, %c0_11], %28 {strides = array<i32>} : memref<192x256xf32, #tpu.memory_space<vmem>>, vector<192x256xf32>,
    return
  }
  func.func @transform_0(%arg0: i32) -> (i32, i32) {
    %c0_i32 = arith.constant 0 : i32
    %c0_i32_0 = arith.constant 0 : i32
    return %arg0, %c0_i32 : i32, i32
  }
  func.func @transform_1(%arg0: i32) -> (i32, i32) {
    %c0_i32 = arith.constant 0 : i32
    %c0_i32_0 = arith.constant 0 : i32
    %c0_i32_1 = arith.constant 0 : i32
    return %c0_i32, %c0_i32_0 : i32, i32
  }
  func.func @transform_2(%arg0: i32) -> (i32, i32) {
    %c0_i32 = arith.constant 0 : i32
    %c0_i32_0 = arith.constant 0 : i32
    %c0_i32_1 = arith.constant 0 : i32
    return %c0_i32, %c0_i32_0 : i32, i32
  }
  func.func @transform_3(%arg0: i32) -> (i32, i32) {
    %c0_i32 = arith.constant 0 : i32
    %c0_i32_0 = arith.constant 0 : i32
    %c0_i32_1 = arith.constant 0 : i32
    return %c0_i32, %c0_i32_0 : i32, i32
  }
  func.func @transform_4(%arg0: i32) -> (i32, i32) {
    %c0_i32 = arith.constant 0 : i32
    %c0_i32_0 = arith.constant 0 : i32
    %c0_i32_1 = arith.constant 0 : i32
    return %c0_i32, %c0_i32_0 : i32, i32
  }
  func.func @transform_5(%arg0: i32) -> (i32, i32) {
    %c0_i32 = arith.constant 0 : i32
    %c0_i32_0 = arith.constant 0 : i32
    return %arg0, %c0_i32 : i32, i32
  }
}

</mosaic_0001>

<llo_original>
// kernel: tpu_custom_call.1
$region0: #{tpu_custom_call.1}
  #allocation0 [shape = 'u32[]', space=smem, size = 0x4, offset = 0x4, fixed_abs, tag = 'smem constant byte address 0x4 - core index']
  #allocation1 [shape = 'u32[72,128]{1,0:T(1,128)}', space=vmem, size = 0x9000, scoped, tag = 'internal scratch']
  %s0 = inlined_call_operand.vmem [shape: f32[192,3], index: 0, kind: input, shape index: {}]
  %s1 = inlined_call_operand.vmem [shape: f32[3,128], index: 1, kind: input, shape index: {}]
  %s2 = inlined_call_operand.vmem [shape: f32[1,128], index: 2, kind: input, shape index: {}]
  %s3 = inlined_call_operand.hbm [shape: f32[128,256], index: 3, kind: input, shape index: {}]
  %s4 = inlined_call_operand.vmem [shape: f32[1,256], index: 4, kind: input, shape index: {}]
  %s5 = inlined_call_operand.hbm [shape: f32[192,256], index: 5, kind: output, shape index: {}]
  %s6 = sld [smem:[#allocation0]]
  $region34: #{tpu_custom_call.1} parent=0
    _
  %s8 = ssub.s32 1, %s6
  %s9 = scalar_select 0, %s8, %s6
  $region1: #{tpu_custom_call.1} parent=0
    #allocation2 [shape = 'u8[131072]{0}', space=vmem, size = 0x20000, scoped, tag = 'input window, operand 3, single buffered']
    #allocation3 [shape = 's32[1]{0}', space=sflag, size = 0x4, scoped, tag = 'scoped memory for tpu_custom_call.1']
    #allocation4 [shape = 's32[1]{0}', space=sflag, size = 0x4, scoped, tag = 'scoped memory for tpu_custom_call.1']
    #allocation5 [shape = 'u8[196608]{0}', space=vmem, size = 0x30000, scoped, tag = 'output window, operand 0, single buffered']
    %10 = vsyncpa [#allocation3], 0
    %11 = vsyncpa [#allocation4], 0
    // Predicated region
    $region2: #{tpu_custom_call.1} parent=1 // pred_check
      _
    $region3: #{tpu_custom_call.1} parent=1 // pred_check_branch
      %13 = sbr.rel (0) target = $region5
    $region4: #{tpu_custom_call.1} parent=1 // pred_region
      _
    $region5: #{tpu_custom_call.1} parent=1 // pred_fallthru
      _
    // Predicated region
    $region6: #{tpu_custom_call.1} parent=1 // pred_check
      _
    $region7: #{tpu_custom_call.1} parent=1 // pred_check_branch
      %15 = sbr.rel (0) target = $region9
    $region8: #{tpu_custom_call.1} parent=1 // pred_region
      _
    $region9: #{tpu_custom_call.1} parent=1 // pred_fallthru
      _
    // Predicated region
    $region10: #{tpu_custom_call.1} parent=1 // pred_check
      _
    $region11: #{tpu_custom_call.1} parent=1 // pred_check_branch
      %17 = sbr.rel (0) target = $region13
    $region12: #{tpu_custom_call.1} parent=1 // pred_region
      _
    $region13: #{tpu_custom_call.1} parent=1 // pred_fallthru
      _
    // Predicated region
    $region14: #{tpu_custom_call.1} parent=1 // pred_check
      _
    $region15: #{tpu_custom_call.1} parent=1 // pred_check_branch
      %19 = sbr.rel (0) target = $region17
    $region16: #{tpu_custom_call.1} parent=1 // pred_region
      %21 = vsyncadd [#allocation3], 0
      %s22 = sshll.u32 %s3, 4
      %s23 = int_to_ptr.hbm [resolvable:$true] %s22
      %s24 = sshll.u32 [#allocation2], 4
      %s25 = int_to_ptr.vmem [resolvable:$true] %s24
      %30 = dma.hbm_to_vmem [thread:$0]  %s23, 4096, %s25, [#allocation3], 256, 256, 16
    $region17: #{tpu_custom_call.1} parent=1 // pred_fallthru
      _
    // Predicated region
    $region18: #{tpu_custom_call.1} parent=1 // pred_check
      _
    $region19: #{tpu_custom_call.1} parent=1 // pred_check_branch
      %32 = sbr.rel (0) target = $region21
    $region20: #{tpu_custom_call.1} parent=1 // pred_region
      _
    $region21: #{tpu_custom_call.1} parent=1 // pred_fallthru
      _
    // Predicated region
    $region22: #{tpu_custom_call.1} parent=1 // pred_check
      _
    $region23: #{tpu_custom_call.1} parent=1 // pred_check_branch
      %34 = sbr.rel (0) target = $region25
    $region24: #{tpu_custom_call.1} parent=1 // pred_region
      %36 = dma.done [#allocation3], 4096
    $region25: #{tpu_custom_call.1} parent=1 // pred_fallthru
      _
    %v37 = vld [vmem:[%s0] sm:$0xff]
    %v38 = vld [vmem:[%s0 + $0x8] sm:$0xff]
    %v39 = vld [vmem:[%s0 + $0x10] sm:$0xff]
    %v40 = vld [vmem:[%s0 + $0x18] sm:$0xff]
    %v41 = vld [vmem:[%s0 + $0x20] sm:$0xff]
    %v42 = vld [vmem:[%s0 + $0x28] sm:$0xff]
    %v43 = vld [vmem:[%s0 + $0x30] sm:$0xff]
    %v44 = vld [vmem:[%s0 + $0x38] sm:$0xff]
    %v45 = vld [vmem:[%s0 + $0x40] sm:$0xff]
    %v46 = vld [vmem:[%s0 + $0x48] sm:$0xff]
    %v47 = vld [vmem:[%s0 + $0x50] sm:$0xff]
    %v48 = vld [vmem:[%s0 + $0x58] sm:$0xff]
    %v49 = vld [vmem:[%s0 + $0x60] sm:$0xff]
    %v50 = vld [vmem:[%s0 + $0x68] sm:$0xff]
    %v51 = vld [vmem:[%s0 + $0x70] sm:$0xff]
    %v52 = vld [vmem:[%s0 + $0x78] sm:$0xff]
    %v53 = vld [vmem:[%s0 + $0x80] sm:$0xff]
    %v54 = vld [vmem:[%s0 + $0x88] sm:$0xff]
    %v55 = vld [vmem:[%s0 + $0x90] sm:$0xff]
    %v56 = vld [vmem:[%s0 + $0x98] sm:$0xff]
    %v57 = vld [vmem:[%s0 + $0xa0] sm:$0xff]
    %v58 = vld [vmem:[%s0 + $0xa8] sm:$0xff]
    %v59 = vld [vmem:[%s0 + $0xb0] sm:$0xff]
    %v60 = vld [vmem:[%s0 + $0xb8] sm:$0xff]
    %v61 = vld [vmem:[%s1] sm:$0x7]
    %63 = vset.pattern.permute.xlu0 0
    %64 = vperm.xlu0 %63, %v37
    %v65 = vpop.permute.xlu0 %64
    %68 = vset.pattern.permute.xlu0 0
    %69 = vperm.xlu0 %68, %v38
    %v70 = vpop.permute.xlu0 %69
    %73 = vset.pattern.permute.xlu0 0
    %74 = vperm.xlu0 %73, %v39
    %v75 = vpop.permute.xlu0 %74
    %78 = vset.pattern.permute.xlu0 0
    %79 = vperm.xlu0 %78, %v40
    %v80 = vpop.permute.xlu0 %79
    %83 = vset.pattern.permute.xlu0 0
    %84 = vperm.xlu0 %83, %v41
    %v85 = vpop.permute.xlu0 %84
    %88 = vset.pattern.permute.xlu0 0
    %89 = vperm.xlu0 %88, %v42
    %v90 = vpop.permute.xlu0 %89
    %93 = vset.pattern.permute.xlu0 0
    %94 = vperm.xlu0 %93, %v43
    %v95 = vpop.permute.xlu0 %94
    %98 = vset.pattern.permute.xlu0 0
    %99 = vperm.xlu0 %98, %v44
    %v100 = vpop.permute.xlu0 %99
    %103 = vset.pattern.permute.xlu0 0
    %104 = vperm.xlu0 %103, %v45
    %v105 = vpop.permute.xlu0 %104
    %108 = vset.pattern.permute.xlu0 0
    %109 = vperm.xlu0 %108, %v46
    %v110 = vpop.permute.xlu0 %109
    %113 = vset.pattern.permute.xlu0 0
    %114 = vperm.xlu0 %113, %v47
    %v115 = vpop.permute.xlu0 %114
    %118 = vset.pattern.permute.xlu0 0
    %119 = vperm.xlu0 %118, %v48
    %v120 = vpop.permute.xlu0 %119
    %123 = vset.pattern.permute.xlu0 0
    %124 = vperm.xlu0 %123, %v49
    %v125 = vpop.permute.xlu0 %124
    %128 = vset.pattern.permute.xlu0 0
    %129 = vperm.xlu0 %128, %v50
    %v130 = vpop.permute.xlu0 %129
    %133 = vset.pattern.permute.xlu0 0
    %134 = vperm.xlu0 %133, %v51
    %v135 = vpop.permute.xlu0 %134
    %138 = vset.pattern.permute.xlu0 0
    %139 = vperm.xlu0 %138, %v52
    %v140 = vpop.permute.xlu0 %139
    %143 = vset.pattern.permute.xlu0 0
    %144 = vperm.xlu0 %143, %v53
    %v145 = vpop.permute.xlu0 %144
    %148 = vset.pattern.permute.xlu0 0
    %149 = vperm.xlu0 %148, %v54
    %v150 = vpop.permute.xlu0 %149
    %153 = vset.pattern.permute.xlu0 0
    %154 = vperm.xlu0 %153, %v55
    %v155 = vpop.permute.xlu0 %154
    %158 = vset.pattern.permute.xlu0 0
    %159 = vperm.xlu0 %158, %v56
    %v160 = vpop.permute.xlu0 %159
    %163 = vset.pattern.permute.xlu0 0
    %164 = vperm.xlu0 %163, %v57
    %v165 = vpop.permute.xlu0 %164
    %168 = vset.pattern.permute.xlu0 0
    %169 = vperm.xlu0 %168, %v58
    %v170 = vpop.permute.xlu0 %169
    %173 = vset.pattern.permute.xlu0 0
    %174 = vperm.xlu0 %173, %v59
    %v175 = vpop.permute.xlu0 %174
    %178 = vset.pattern.permute.xlu0 0
    %179 = vperm.xlu0 %178, %v60
    %v180 = vpop.permute.xlu0 %179
    %v182 = vperm.slane %v61, 0
    %v183 = vmul.f32 %v65, %v182
    %v184 = vmul.f32 %v70, %v182
    %v185 = vmul.f32 %v75, %v182
    %v186 = vmul.f32 %v80, %v182
    %v187 = vmul.f32 %v85, %v182
    %v188 = vmul.f32 %v90, %v182
    %v189 = vmul.f32 %v95, %v182
    %v190 = vmul.f32 %v100, %v182
    %v191 = vmul.f32 %v105, %v182
    %v192 = vmul.f32 %v110, %v182
    %v193 = vmul.f32 %v115, %v182
    %v194 = vmul.f32 %v120, %v182
    %v195 = vmul.f32 %v125, %v182
    %v196 = vmul.f32 %v130, %v182
    %v197 = vmul.f32 %v135, %v182
    %v198 = vmul.f32 %v140, %v182
    %v199 = vmul.f32 %v145, %v182
    %v200 = vmul.f32 %v150, %v182
    %v201 = vmul.f32 %v155, %v182
    %v202 = vmul.f32 %v160, %v182
    %v203 = vmul.f32 %v165, %v182
    %v204 = vmul.f32 %v170, %v182
    %v205 = vmul.f32 %v175, %v182
    %v206 = vmul.f32 %v180, %v182
    %207 = vset.pattern.permute.xlu0 1
    %208 = vperm.xlu0 %207, %v37
    %v209 = vpop.permute.xlu0 %208
    %211 = vset.pattern.permute.xlu0 1
    %212 = vperm.xlu0 %211, %v38
    %v213 = vpop.permute.xlu0 %212
    %215 = vset.pattern.permute.xlu0 1
    %216 = vperm.xlu0 %215, %v39
    %v217 = vpop.permute.xlu0 %216
    %219 = vset.pattern.permute.xlu0 1
    %220 = vperm.xlu0 %219, %v40
    %v221 = vpop.permute.xlu0 %220
    %223 = vset.pattern.permute.xlu0 1
    %224 = vperm.xlu0 %223, %v41
    %v225 = vpop.permute.xlu0 %224
    %227 = vset.pattern.permute.xlu0 1
    %228 = vperm.xlu0 %227, %v42
    %v229 = vpop.permute.xlu0 %228
    %231 = vset.pattern.permute.xlu0 1
    %232 = vperm.xlu0 %231, %v43
    %v233 = vpop.permute.xlu0 %232
    %235 = vset.pattern.permute.xlu0 1
    %236 = vperm.xlu0 %235, %v44
    %v237 = vpop.permute.xlu0 %236
    %239 = vset.pattern.permute.xlu0 1
    %240 = vperm.xlu0 %239, %v45
    %v241 = vpop.permute.xlu0 %240
    %243 = vset.pattern.permute.xlu0 1
    %244 = vperm.xlu0 %243, %v46
    %v245 = vpop.permute.xlu0 %244
    %247 = vset.pattern.permute.xlu0 1
    %248 = vperm.xlu0 %247, %v47
    %v249 = vpop.permute.xlu0 %248
    %251 = vset.pattern.permute.xlu0 1
    %252 = vperm.xlu0 %251, %v48
    %v253 = vpop.permute.xlu0 %252
    %255 = vset.pattern.permute.xlu0 1
    %256 = vperm.xlu0 %255, %v49
    %v257 = vpop.permute.xlu0 %256
    %259 = vset.pattern.permute.xlu0 1
    %260 = vperm.xlu0 %259, %v50
    %v261 = vpop.permute.xlu0 %260
    %263 = vset.pattern.permute.xlu0 1
    %264 = vperm.xlu0 %263, %v51
    %v265 = vpop.permute.xlu0 %264
    %267 = vset.pattern.permute.xlu0 1
    %268 = vperm.xlu0 %267, %v52
    %v269 = vpop.permute.xlu0 %268
    %271 = vset.pattern.permute.xlu0 1
    %272 = vperm.xlu0 %271, %v53
    %v273 = vpop.permute.xlu0 %272
    %275 = vset.pattern.permute.xlu0 1
    %276 = vperm.xlu0 %275, %v54
    %v277 = vpop.permute.xlu0 %276
    %279 = vset.pattern.permute.xlu0 1
    %280 = vperm.xlu0 %279, %v55
    %v281 = vpop.permute.xlu0 %280
    %283 = vset.pattern.permute.xlu0 1
    %284 = vperm.xlu0 %283, %v56
    %v285 = vpop.permute.xlu0 %284
    %287 = vset.pattern.permute.xlu0 1
    %288 = vperm.xlu0 %287, %v57
    %v289 = vpop.permute.xlu0 %288
    %291 = vset.pattern.permute.xlu0 1
    %292 = vperm.xlu0 %291, %v58
    %v293 = vpop.permute.xlu0 %292
    %295 = vset.pattern.permute.xlu0 1
    %296 = vperm.xlu0 %295, %v59
    %v297 = vpop.permute.xlu0 %296
    %299 = vset.pattern.permute.xlu0 1
    %300 = vperm.xlu0 %299, %v60
    %v301 = vpop.permute.xlu0 %300
    %v303 = vperm.slane %v61, 1
    %v304 = vmul.f32 %v209, %v303
    %v305 = vmul.f32 %v213, %v303
    %v306 = vmul.f32 %v217, %v303
    %v307 = vmul.f32 %v221, %v303
    %v308 = vmul.f32 %v225, %v303
    %v309 = vmul.f32 %v229, %v303
    %v310 = vmul.f32 %v233, %v303
    %v311 = vmul.f32 %v237, %v303
    %v312 = vmul.f32 %v241, %v303
    %v313 = vmul.f32 %v245, %v303
    %v314 = vmul.f32 %v249, %v303
    %v315 = vmul.f32 %v253, %v303
    %v316 = vmul.f32 %v257, %v303
    %v317 = vmul.f32 %v261, %v303
    %v318 = vmul.f32 %v265, %v303
    %v319 = vmul.f32 %v269, %v303
    %v320 = vmul.f32 %v273, %v303
    %v321 = vmul.f32 %v277, %v303
    %v322 = vmul.f32 %v281, %v303
    %v323 = vmul.f32 %v285, %v303
    %v324 = vmul.f32 %v289, %v303
    %v325 = vmul.f32 %v293, %v303
    %v326 = vmul.f32 %v297, %v303
    %v327 = vmul.f32 %v301, %v303
    %v328 = vadd.f32 %v183, %v304
    %v329 = vadd.f32 %v184, %v305
    %v330 = vadd.f32 %v185, %v306
    %v331 = vadd.f32 %v186, %v307
    %v332 = vadd.f32 %v187, %v308
    %v333 = vadd.f32 %v188, %v309
    %v334 = vadd.f32 %v189, %v310
    %v335 = vadd.f32 %v190, %v311
    %v336 = vadd.f32 %v191, %v312
    %v337 = vadd.f32 %v192, %v313
    %v338 = vadd.f32 %v193, %v314
    %v339 = vadd.f32 %v194, %v315
    %v340 = vadd.f32 %v195, %v316
    %v341 = vadd.f32 %v196, %v317
    %v342 = vadd.f32 %v197, %v318
    %v343 = vadd.f32 %v198, %v319
    %v344 = vadd.f32 %v199, %v320
    %v345 = vadd.f32 %v200, %v321
    %v346 = vadd.f32 %v201, %v322
    %v347 = vadd.f32 %v202, %v323
    %v348 = vadd.f32 %v203, %v324
    %v349 = vadd.f32 %v204, %v325
    %v350 = vadd.f32 %v205, %v326
    %v351 = vadd.f32 %v206, %v327
    %352 = vset.pattern.permute.xlu0 2
    %353 = vperm.xlu0 %352, %v37
    %v354 = vpop.permute.xlu0 %353
    %356 = vset.pattern.permute.xlu0 2
    %357 = vperm.xlu0 %356, %v38
    %v358 = vpop.permute.xlu0 %357
    %360 = vset.pattern.permute.xlu0 2
    %361 = vperm.xlu0 %360, %v39
    %v362 = vpop.permute.xlu0 %361
    %364 = vset.pattern.permute.xlu0 2
    %365 = vperm.xlu0 %364, %v40
    %v366 = vpop.permute.xlu0 %365
    %368 = vset.pattern.permute.xlu0 2
    %369 = vperm.xlu0 %368, %v41
    %v370 = vpop.permute.xlu0 %369
    %372 = vset.pattern.permute.xlu0 2
    %373 = vperm.xlu0 %372, %v42
    %v374 = vpop.permute.xlu0 %373
    %376 = vset.pattern.permute.xlu0 2
    %377 = vperm.xlu0 %376, %v43
    %v378 = vpop.permute.xlu0 %377
    %380 = vset.pattern.permute.xlu0 2
    %381 = vperm.xlu0 %380, %v44
    %v382 = vpop.permute.xlu0 %381
    %384 = vset.pattern.permute.xlu0 2
    %385 = vperm.xlu0 %384, %v45
    %v386 = vpop.permute.xlu0 %385
    %388 = vset.pattern.permute.xlu0 2
    %389 = vperm.xlu0 %388, %v46
    %v390 = vpop.permute.xlu0 %389
    %392 = vset.pattern.permute.xlu0 2
    %393 = vperm.xlu0 %392, %v47
    %v394 = vpop.permute.xlu0 %393
    %396 = vset.pattern.permute.xlu0 2
    %397 = vperm.xlu0 %396, %v48
    %v398 = vpop.permute.xlu0 %397
    %400 = vset.pattern.permute.xlu0 2
    %401 = vperm.xlu0 %400, %v49
    %v402 = vpop.permute.xlu0 %401
    %404 = vset.pattern.permute.xlu0 2
    %405 = vperm.xlu0 %404, %v50
    %v406 = vpop.permute.xlu0 %405
    %408 = vset.pattern.permute.xlu0 2
    %409 = vperm.xlu0 %408, %v51
    %v410 = vpop.permute.xlu0 %409
    %412 = vset.pattern.permute.xlu0 2
    %413 = vperm.xlu0 %412, %v52
    %v414 = vpop.permute.xlu0 %413
    %416 = vset.pattern.permute.xlu0 2
    %417 = vperm.xlu0 %416, %v53
    %v418 = vpop.permute.xlu0 %417
    %420 = vset.pattern.permute.xlu0 2
    %421 = vperm.xlu0 %420, %v54
    %v422 = vpop.permute.xlu0 %421
    %424 = vset.pattern.permute.xlu0 2
    %425 = vperm.xlu0 %424, %v55
    %v426 = vpop.permute.xlu0 %425
    %428 = vset.pattern.permute.xlu0 2
    %429 = vperm.xlu0 %428, %v56
    %v430 = vpop.permute.xlu0 %429
    %432 = vset.pattern.permute.xlu0 2
    %433 = vperm.xlu0 %432, %v57
    %v434 = vpop.permute.xlu0 %433
    %436 = vset.pattern.permute.xlu0 2
    %437 = vperm.xlu0 %436, %v58
    %v438 = vpop.permute.xlu0 %437
    %440 = vset.pattern.permute.xlu0 2
    %441 = vperm.xlu0 %440, %v59
    %v442 = vpop.permute.xlu0 %441
    %444 = vset.pattern.permute.xlu0 2
    %445 = vperm.xlu0 %444, %v60
    %v446 = vpop.permute.xlu0 %445
    %v448 = vperm.slane %v61, 2
    %v449 = vmul.f32 %v354, %v448
    %v450 = vmul.f32 %v358, %v448
    %v451 = vmul.f32 %v362, %v448
    %v452 = vmul.f32 %v366, %v448
    %v453 = vmul.f32 %v370, %v448
    %v454 = vmul.f32 %v374, %v448
    %v455 = vmul.f32 %v378, %v448
    %v456 = vmul.f32 %v382, %v448
    %v457 = vmul.f32 %v386, %v448
    %v458 = vmul.f32 %v390, %v448
    %v459 = vmul.f32 %v394, %v448
    %v460 = vmul.f32 %v398, %v448
    %v461 = vmul.f32 %v402, %v448
    %v462 = vmul.f32 %v406, %v448
    %v463 = vmul.f32 %v410, %v448
    %v464 = vmul.f32 %v414, %v448
    %v465 = vmul.f32 %v418, %v448
    %v466 = vmul.f32 %v422, %v448
    %v467 = vmul.f32 %v426, %v448
    %v468 = vmul.f32 %v430, %v448
    %v469 = vmul.f32 %v434, %v448
    %v470 = vmul.f32 %v438, %v448
    %v471 = vmul.f32 %v442, %v448
    %v472 = vmul.f32 %v446, %v448
    %v473 = vadd.f32 %v328, %v449
    %v474 = vadd.f32 %v329, %v450
    %v475 = vadd.f32 %v330, %v451
    %v476 = vadd.f32 %v331, %v452
    %v477 = vadd.f32 %v332, %v453
    %v478 = vadd.f32 %v333, %v454
    %v479 = vadd.f32 %v334, %v455
    %v480 = vadd.f32 %v335, %v456
    %v481 = vadd.f32 %v336, %v457
    %v482 = vadd.f32 %v337, %v458
    %v483 = vadd.f32 %v338, %v459
    %v484 = vadd.f32 %v339, %v460
    %v485 = vadd.f32 %v340, %v461
    %v486 = vadd.f32 %v341, %v462
    %v487 = vadd.f32 %v342, %v463
    %v488 = vadd.f32 %v343, %v464
    %v489 = vadd.f32 %v344, %v465
    %v490 = vadd.f32 %v345, %v466
    %v491 = vadd.f32 %v346, %v467
    %v492 = vadd.f32 %v347, %v468
    %v493 = vadd.f32 %v348, %v469
    %v494 = vadd.f32 %v349, %v470
    %v495 = vadd.f32 %v350, %v471
    %v496 = vadd.f32 %v351, %v472
    %v497 = vld [vmem:[%s2] sm:$0x1]
    %v499 = vperm.slane %v497, 0
    %v501 = vadd.f32 %v473, %v499
    %v502 = vadd.f32 %v474, %v499
    %v503 = vadd.f32 %v475, %v499
    %v504 = vadd.f32 %v476, %v499
    %v505 = vadd.f32 %v477, %v499
    %v506 = vadd.f32 %v478, %v499
    %v507 = vadd.f32 %v479, %v499
    %v508 = vadd.f32 %v480, %v499
    %v509 = vadd.f32 %v481, %v499
    %v510 = vadd.f32 %v482, %v499
    %v511 = vadd.f32 %v483, %v499
    %v512 = vadd.f32 %v484, %v499
    %v513 = vadd.f32 %v485, %v499
    %v514 = vadd.f32 %v486, %v499
    %v515 = vadd.f32 %v487, %v499
    %v516 = vadd.f32 %v488, %v499
    %v517 = vadd.f32 %v489, %v499
    %v518 = vadd.f32 %v490, %v499
    %v519 = vadd.f32 %v491, %v499
    %v520 = vadd.f32 %v492, %v499
    %v521 = vadd.f32 %v493, %v499
    %v522 = vadd.f32 %v494, %v499
    %v523 = vadd.f32 %v495, %v499
    %v524 = vadd.f32 %v496, %v499
    %v525 = vmax.f32 %v501, 0.0
    %v526 = vmax.f32 %v502, 0.0
    %v527 = vmax.f32 %v503, 0.0
    %v528 = vmax.f32 %v504, 0.0
    %v529 = vmax.f32 %v505, 0.0
    %v530 = vmax.f32 %v506, 0.0
    %v531 = vmax.f32 %v507, 0.0
    %v532 = vmax.f32 %v508, 0.0
    %v533 = vmax.f32 %v509, 0.0
    %v534 = vmax.f32 %v510, 0.0
    %v535 = vmax.f32 %v511, 0.0
    %v536 = vmax.f32 %v512, 0.0
    %v537 = vmax.f32 %v513, 0.0
    %v538 = vmax.f32 %v514, 0.0
    %v539 = vmax.f32 %v515, 0.0
    %v540 = vmax.f32 %v516, 0.0
    %v541 = vmax.f32 %v517, 0.0
    %v542 = vmax.f32 %v518, 0.0
    %v543 = vmax.f32 %v519, 0.0
    %v544 = vmax.f32 %v520, 0.0
    %v545 = vmax.f32 %v521, 0.0
    %v546 = vmax.f32 %v522, 0.0
    %v547 = vmax.f32 %v523, 0.0
    %v548 = vmax.f32 %v524, 0.0
    %v549 = vld [vmem:[#allocation2] sm:$0xff]
    %v550 = vld [vmem:[#allocation2 + $0x8] sm:$0xff]
    %v551 = vld [vmem:[#allocation2 + $0x10] sm:$0xff]
    %v552 = vld [vmem:[#allocation2 + $0x18] sm:$0xff]
    %v553 = vld [vmem:[#allocation2 + $0x20] sm:$0xff]
    %v554 = vld [vmem:[#allocation2 + $0x28] sm:$0xff]
    %v555 = vld [vmem:[#allocation2 + $0x30] sm:$0xff]
    %v556 = vld [vmem:[#allocation2 + $0x38] sm:$0xff]
    %v557 = vld [vmem:[#allocation2 + $0x40] sm:$0xff]
    %v558 = vld [vmem:[#allocation2 + $0x48] sm:$0xff]
    %v559 = vld [vmem:[#allocation2 + $0x50] sm:$0xff]
    %v560 = vld [vmem:[#allocation2 + $0x58] sm:$0xff]
    %v561 = vld [vmem:[#allocation2 + $0x60] sm:$0xff]
    %v562 = vld [vmem:[#allocation2 + $0x68] sm:$0xff]
    %v563 = vld [vmem:[#allocation2 + $0x70] sm:$0xff]
    %v564 = vld [vmem:[#allocation2 + $0x78] sm:$0xff]
    %v565 = vld [vmem:[#allocation2 + $0x80] sm:$0xff]
    %v566 = vld [vmem:[#allocation2 + $0x88] sm:$0xff]
    %v567 = vld [vmem:[#allocation2 + $0x90] sm:$0xff]
    %v568 = vld [vmem:[#allocation2 + $0x98] sm:$0xff]
    %v569 = vld [vmem:[#allocation2 + $0xa0] sm:$0xff]
    %v570 = vld [vmem:[#allocation2 + $0xa8] sm:$0xff]
    %v571 = vld [vmem:[#allocation2 + $0xb0] sm:$0xff]
    %v572 = vld [vmem:[#allocation2 + $0xb8] sm:$0xff]
    %v573 = vld [vmem:[#allocation2 + $0xc0] sm:$0xff]
    %v574 = vld [vmem:[#allocation2 + $0xc8] sm:$0xff]
    %v575 = vld [vmem:[#allocation2 + $0xd0] sm:$0xff]
    %v576 = vld [vmem:[#allocation2 + $0xd8] sm:$0xff]
    %v577 = vld [vmem:[#allocation2 + $0xe0] sm:$0xff]
    %v578 = vld [vmem:[#allocation2 + $0xe8] sm:$0xff]
    %v579 = vld [vmem:[#allocation2 + $0xf0] sm:$0xff]
    %v580 = vld [vmem:[#allocation2 + $0xf8] sm:$0xff]
    %v581 = vld [vmem:[%s4] sm:$0x3]
    %v583 = vperm.slane %v581, 0
    %v584 = vperm.slane %v581, 1
    %587 = vmatpush.msra.mxu0 %v579
    %588 = vmatpush.msra.mxu0 %v577
    %589 = vmatpush.msra.mxu0 %v575
    %590 = vmatpush.msra.mxu0 %v573
    %591 = vmatpush.msra.mxu0 %v571
    %592 = vmatpush.msra.mxu0 %v569
    %593 = vmatpush.msra.mxu0 %v567
    %594 = vmatpush.msra.mxu0 %v565
    %595 = vmatpush.msra.mxu0 %v563
    %596 = vmatpush.msra.mxu0 %v561
    %597 = vmatpush.msra.mxu0 %v559
    %598 = vmatpush.msra.mxu0 %v557
    %599 = vmatpush.msra.mxu0 %v555
    %600 = vmatpush.msra.mxu0 %v553
    %601 = vmatpush.msra.mxu0 %v551
    %602 = vmatpush.msra.mxu0 %v549
    %603 = vmatmul.f32.gmra.mxu0 %v525
    %v604 = vpop.f32.mrf.mxu0
    %v605 = vadd.f32 %v583, %v604
    %606 = vmatmul.f32.gmra.mxu0 %v526
    %v607 = vpop.f32.mrf.mxu0
    %v608 = vadd.f32 %v583, %v607
    %609 = vmatmul.f32.gmra.mxu0 %v527
    %v610 = vpop.f32.mrf.mxu0
    %v611 = vadd.f32 %v583, %v610
    %612 = vmatmul.f32.gmra.mxu0 %v528
    %v613 = vpop.f32.mrf.mxu0
    %v614 = vadd.f32 %v583, %v613
    %615 = vmatmul.f32.gmra.mxu0 %v529
    %v616 = vpop.f32.mrf.mxu0
    %v617 = vadd.f32 %v583, %v616
    %618 = vmatmul.f32.gmra.mxu0 %v530
    %v619 = vpop.f32.mrf.mxu0
    %v620 = vadd.f32 %v583, %v619
    %621 = vmatmul.f32.gmra.mxu0 %v531
    %v622 = vpop.f32.mrf.mxu0
    %v623 = vadd.f32 %v583, %v622
    %624 = vmatmul.f32.gmra.mxu0 %v532
    %v625 = vpop.f32.mrf.mxu0
    %v626 = vadd.f32 %v583, %v625
    %627 = vmatmul.f32.gmra.mxu0 %v533
    %v628 = vpop.f32.mrf.mxu0
    %v629 = vadd.f32 %v583, %v628
    %630 = vmatmul.f32.gmra.mxu0 %v534
    %v631 = vpop.f32.mrf.mxu0
    %v632 = vadd.f32 %v583, %v631
    %633 = vmatmul.f32.gmra.mxu0 %v535
    %v634 = vpop.f32.mrf.mxu0
    %v635 = vadd.f32 %v583, %v634
    %636 = vmatmul.f32.gmra.mxu0 %v536
    %v637 = vpop.f32.mrf.mxu0
    %v638 = vadd.f32 %v583, %v637
    %639 = vmatmul.f32.gmra.mxu0 %v537
    %v640 = vpop.f32.mrf.mxu0
    %v641 = vadd.f32 %v583, %v640
    %642 = vmatmul.f32.gmra.mxu0 %v538
    %v643 = vpop.f32.mrf.mxu0
    %v644 = vadd.f32 %v583, %v643
    %645 = vmatmul.f32.gmra.mxu0 %v539
    %v646 = vpop.f32.mrf.mxu0
    %v647 = vadd.f32 %v583, %v646
    %648 = vmatmul.f32.gmra.mxu0 %v540
    %v649 = vpop.f32.mrf.mxu0
    %v650 = vadd.f32 %v583, %v649
    %651 = vmatmul.f32.gmra.mxu0 %v541
    %v652 = vpop.f32.mrf.mxu0
    %v653 = vadd.f32 %v583, %v652
    %654 = vmatmul.f32.gmra.mxu0 %v542
    %v655 = vpop.f32.mrf.mxu0
    %v656 = vadd.f32 %v583, %v655
    %657 = vmatmul.f32.gmra.mxu0 %v543
    %v658 = vpop.f32.mrf.mxu0
    %v659 = vadd.f32 %v583, %v658
    %660 = vmatmul.f32.gmra.mxu0 %v544
    %v661 = vpop.f32.mrf.mxu0
    %v662 = vadd.f32 %v583, %v661
    %663 = vmatmul.f32.gmra.mxu0 %v545
    %v664 = vpop.f32.mrf.mxu0
    %v665 = vadd.f32 %v583, %v664
    %666 = vmatmul.f32.gmra.mxu0 %v546
    %v667 = vpop.f32.mrf.mxu0
    %v668 = vadd.f32 %v583, %v667
    %669 = vmatmul.f32.gmra.mxu0 %v547
    %v670 = vpop.f32.mrf.mxu0
    %v671 = vadd.f32 %v583, %v670
    %672 = vmatmul.f32.gmra.mxu0 %v548
    %v673 = vpop.f32.mrf.mxu0
    %v674 = vadd.f32 %v583, %v673
    %675 = vdwg.mxu0
    %676 = vmatpush.msra.mxu0 %v580
    %677 = vmatpush.msra.mxu0 %v578
    %678 = vmatpush.msra.mxu0 %v576
    %679 = vmatpush.msra.mxu0 %v574
    %680 = vmatpush.msra.mxu0 %v572
    %681 = vmatpush.msra.mxu0 %v570
    %682 = vmatpush.msra.mxu0 %v568
    %683 = vmatpush.msra.mxu0 %v566
    %684 = vmatpush.msra.mxu0 %v564
    %685 = vmatpush.msra.mxu0 %v562
    %686 = vmatpush.msra.mxu0 %v560
    %687 = vmatpush.msra.mxu0 %v558
    %688 = vmatpush.msra.mxu0 %v556
    %689 = vmatpush.msra.mxu0 %v554
    %690 = vmatpush.msra.mxu0 %v552
    %691 = vmatpush.msra.mxu0 %v550
    %692 = vmatmul.f32.gmra.mxu0 %v525
    %v693 = vpop.f32.mrf.mxu0
    %v694 = vadd.f32 %v584, %v693
    %695 = vmatmul.f32.gmra.mxu0 %v526
    %v696 = vpop.f32.mrf.mxu0
    %v697 = vadd.f32 %v584, %v696
    %698 = vmatmul.f32.gmra.mxu0 %v527
    %v699 = vpop.f32.mrf.mxu0
    %v700 = vadd.f32 %v584, %v699
    %701 = vmatmul.f32.gmra.mxu0 %v528
    %v702 = vpop.f32.mrf.mxu0
    %v703 = vadd.f32 %v584, %v702
    %704 = vmatmul.f32.gmra.mxu0 %v529
    %v705 = vpop.f32.mrf.mxu0
    %v706 = vadd.f32 %v584, %v705
    %707 = vmatmul.f32.gmra.mxu0 %v530
    %v708 = vpop.f32.mrf.mxu0
    %v709 = vadd.f32 %v584, %v708
    %710 = vmatmul.f32.gmra.mxu0 %v531
    %v711 = vpop.f32.mrf.mxu0
    %v712 = vadd.f32 %v584, %v711
    %713 = vmatmul.f32.gmra.mxu0 %v532
    %v714 = vpop.f32.mrf.mxu0
    %v715 = vadd.f32 %v584, %v714
    %716 = vmatmul.f32.gmra.mxu0 %v533
    %v717 = vpop.f32.mrf.mxu0
    %v718 = vadd.f32 %v584, %v717
    %719 = vmatmul.f32.gmra.mxu0 %v534
    %v720 = vpop.f32.mrf.mxu0
    %v721 = vadd.f32 %v584, %v720
    %722 = vmatmul.f32.gmra.mxu0 %v535
    %v723 = vpop.f32.mrf.mxu0
    %v724 = vadd.f32 %v584, %v723
    %725 = vmatmul.f32.gmra.mxu0 %v536
    %v726 = vpop.f32.mrf.mxu0
    %v727 = vadd.f32 %v584, %v726
    %728 = vmatmul.f32.gmra.mxu0 %v537
    %v729 = vpop.f32.mrf.mxu0
    %v730 = vadd.f32 %v584, %v729
    %731 = vmatmul.f32.gmra.mxu0 %v538
    %v732 = vpop.f32.mrf.mxu0
    %v733 = vadd.f32 %v584, %v732
    %734 = vmatmul.f32.gmra.mxu0 %v539
    %v735 = vpop.f32.mrf.mxu0
    %v736 = vadd.f32 %v584, %v735
    %737 = vmatmul.f32.gmra.mxu0 %v540
    %v738 = vpop.f32.mrf.mxu0
    %v739 = vadd.f32 %v584, %v738
    %740 = vmatmul.f32.gmra.mxu0 %v541
    %v741 = vpop.f32.mrf.mxu0
    %v742 = vadd.f32 %v584, %v741
    %743 = vmatmul.f32.gmra.mxu0 %v542
    %v744 = vpop.f32.mrf.mxu0
    %v745 = vadd.f32 %v584, %v744
    %746 = vmatmul.f32.gmra.mxu0 %v543
    %v747 = vpop.f32.mrf.mxu0
    %v748 = vadd.f32 %v584, %v747
    %749 = vmatmul.f32.gmra.mxu0 %v544
    %v750 = vpop.f32.mrf.mxu0
    %v751 = vadd.f32 %v584, %v750
    %752 = vmatmul.f32.gmra.mxu0 %v545
    %v753 = vpop.f32.mrf.mxu0
    %v754 = vadd.f32 %v584, %v753
    %755 = vmatmul.f32.gmra.mxu0 %v546
    %v756 = vpop.f32.mrf.mxu0
    %v757 = vadd.f32 %v584, %v756
    %758 = vmatmul.f32.gmra.mxu0 %v547
    %v759 = vpop.f32.mrf.mxu0
    %v760 = vadd.f32 %v584, %v759
    %761 = vmatmul.f32.gmra.mxu0 %v548
    %v762 = vpop.f32.mrf.mxu0
    %v763 = vadd.f32 %v584, %v762
    %764 = vdwg.mxu0
    %765 = vst [vmem:[#allocation5] sm:$0xff] %v605
    %766 = vst [vmem:[#allocation5 + $0x8] sm:$0xff] %v694
    %767 = vst [vmem:[#allocation5 + $0x10] sm:$0xff] %v608
    %768 = vst [vmem:[#allocation5 + $0x18] sm:$0xff] %v697
    %769 = vst [vmem:[#allocation5 + $0x20] sm:$0xff] %v611
    %770 = vst [vmem:[#allocation5 + $0x28] sm:$0xff] %v700
    %771 = vst [vmem:[#allocation5 + $0x30] sm:$0xff] %v614
    %772 = vst [vmem:[#allocation5 + $0x38] sm:$0xff] %v703
    %773 = vst [vmem:[#allocation5 + $0x40] sm:$0xff] %v617
    %774 = vst [vmem:[#allocation5 + $0x48] sm:$0xff] %v706
    %775 = vst [vmem:[#allocation5 + $0x50] sm:$0xff] %v620
    %776 = vst [vmem:[#allocation5 + $0x58] sm:$0xff] %v709
    %777 = vst [vmem:[#allocation5 + $0x60] sm:$0xff] %v623
    %778 = vst [vmem:[#allocation5 + $0x68] sm:$0xff] %v712
    %779 = vst [vmem:[#allocation5 + $0x70] sm:$0xff] %v626
    %780 = vst [vmem:[#allocation5 + $0x78] sm:$0xff] %v715
    %781 = vst [vmem:[#allocation5 + $0x80] sm:$0xff] %v629
    %782 = vst [vmem:[#allocation5 + $0x88] sm:$0xff] %v718
    %783 = vst [vmem:[#allocation5 + $0x90] sm:$0xff] %v632
    %784 = vst [vmem:[#allocation5 + $0x98] sm:$0xff] %v721
    %785 = vst [vmem:[#allocation5 + $0xa0] sm:$0xff] %v635
    %786 = vst [vmem:[#allocation5 + $0xa8] sm:$0xff] %v724
    %787 = vst [vmem:[#allocation5 + $0xb0] sm:$0xff] %v638
    %788 = vst [vmem:[#allocation5 + $0xb8] sm:$0xff] %v727
    %789 = vst [vmem:[#allocation5 + $0xc0] sm:$0xff] %v641
    %790 = vst [vmem:[#allocation5 + $0xc8] sm:$0xff] %v730
    %791 = vst [vmem:[#allocation5 + $0xd0] sm:$0xff] %v644
    %792 = vst [vmem:[#allocation5 + $0xd8] sm:$0xff] %v733
    %793 = vst [vmem:[#allocation5 + $0xe0] sm:$0xff] %v647
    %794 = vst [vmem:[#allocation5 + $0xe8] sm:$0xff] %v736
    %795 = vst [vmem:[#allocation5 + $0xf0] sm:$0xff] %v650
    %796 = vst [vmem:[#allocation5 + $0xf8] sm:$0xff] %v739
    %797 = vst [vmem:[#allocation5 + $0x100] sm:$0xff] %v653
    %798 = vst [vmem:[#allocation5 + $0x108] sm:$0xff] %v742
    %799 = vst [vmem:[#allocation5 + $0x110] sm:$0xff] %v656
    %800 = vst [vmem:[#allocation5 + $0x118] sm:$0xff] %v745
    %801 = vst [vmem:[#allocation5 + $0x120] sm:$0xff] %v659
    %802 = vst [vmem:[#allocation5 + $0x128] sm:$0xff] %v748
    %803 = vst [vmem:[#allocation5 + $0x130] sm:$0xff] %v662
    %804 = vst [vmem:[#allocation5 + $0x138] sm:$0xff] %v751
    %805 = vst [vmem:[#allocation5 + $0x140] sm:$0xff] %v665
    %806 = vst [vmem:[#allocation5 + $0x148] sm:$0xff] %v754
    %807 = vst [vmem:[#allocation5 + $0x150] sm:$0xff] %v668
    %808 = vst [vmem:[#allocation5 + $0x158] sm:$0xff] %v757
    %809 = vst [vmem:[#allocation5 + $0x160] sm:$0xff] %v671
    %810 = vst [vmem:[#allocation5 + $0x168] sm:$0xff] %v760
    %811 = vst [vmem:[#allocation5 + $0x170] sm:$0xff] %v674
    %812 = vst [vmem:[#allocation5 + $0x178] sm:$0xff] %v763
    // Predicated region
    $region26: #{tpu_custom_call.1} parent=1 // pred_check
      _
    $region27: #{tpu_custom_call.1} parent=1 // pred_check_branch
      %814 = sbr.rel (0) target = $region29
    $region28: #{tpu_custom_call.1} parent=1 // pred_region
      %816 = vsyncadd [#allocation4], 0
      %s817 = sshll.u32 [#allocation5], 4
      %s818 = int_to_ptr.vmem [resolvable:$true] %s817
      %s819 = sshll.u32 %s5, 4
      %s820 = int_to_ptr.hbm [resolvable:$true] %s819
      %825 = dma.vmem_to_hbm [thread:$0]  %s818, 6144, %s820, [#allocation4], 256, 256, 16
    $region29: #{tpu_custom_call.1} parent=1 // pred_fallthru
      _
    // Predicated region
    $region30: #{tpu_custom_call.1} parent=1 // pred_check
      _
    $region31: #{tpu_custom_call.1} parent=1 // pred_check_branch
      %827 = sbr.rel (0) target = $region33
    $region32: #{tpu_custom_call.1} parent=1 // pred_region
      %829 = dma.done [#allocation4], 6144
    $region33: #{tpu_custom_call.1} parent=1 // pred_fallthru
      _
    %830 = vsyncpa [#allocation3], 1
    %831 = vsyncpa [#allocation4], 1

</llo_original>
